<compile_context>
chip_gen: v6e
topology: v6e:2x2x1
jax: 0.10.0
libtpu: 0.0.40
codegen_flags: <defaults>
</compile_context>

<pallas_src>
from functools import partial

import jax
import jax.numpy as jnp
from jax import lax
from jax.experimental import pallas as pl
from jax.experimental.pallas import tpu as pltpu


def _round_up(x, m):
    return (x + m - 1) // m * m


def dcn_kernel(x_ref, *refs, num_fields, layer_num, h1):
    """One batch tile of the DCN forward pass (feature-major layout).

    x_ref : (F, TB) int32   per-field categorical indices for this tile
    refs  : F fused tables M_f (H1+L+1, V_f) bf16,
            q (L+1, L) f32, c1 (H1, 1) f32, w2 (H2, H1) bf16, c2 (H2, 1) f32,
            wfd (H2, 1) f32, bf (1, 1) f32, out (1, TB) f32
    """
    m_refs = refs[:num_fields]
    q_ref, c1_ref, w2_ref, c2_ref, wfd_ref, bf_ref, out_ref = refs[num_fields:]

    tb = x_ref.shape[1]
    L = layer_num

    # ---- In-kernel embedding gather fused with the first-stage matmul ----
    # M_f = [W1 | cross_w | wf_cross][:, field f] @ E_f^T  (precomputed, bf16),
    # so  r = sum_f M_f @ onehot_f = [W1.x0 ; w_0.x0 ; ... ; w_{L-1}.x0 ; wf_c.x0]
    # and x0 = concat(embeddings) is never materialized.
    # TODO(synk): for large vocabularies the one-hot matmul should be replaced
    # by a per-row DMA gather (memory_space=pl.ANY + make_async_copy).
    r = None
    for f in range(num_fields):
        vocab = m_refs[f].shape[1]
        idx = x_ref[f:f + 1, :]                                    # (1, TB) int32
        rows = lax.broadcasted_iota(jnp.int32, (vocab, tb), 0)
        onehot = jnp.where(rows == idx, 1.0, 0.0).astype(jnp.bfloat16)  # exact {0,1}
        part = jnp.dot(m_refs[f][...], onehot,
                       preferred_element_type=jnp.float32)         # (H1+L+1, TB)
        r = part if r is None else r + part

    # ---- Cross network via its linear functionals (no (D, TB) state) ----
    # t[m] tracks v_m . x_l for v_m in {w_0..w_{L-1}, wf_cross};
    # q[m, l] = v_m . b_l is precomputed in f32.
    p = r[h1:h1 + L + 1, :]                                         # (L+1, TB) = v_m.x0
    q = q_ref[...]                                                  # (L+1, L)
    t = p
    for l in range(L):
        s = t[l:l + 1, :]                                           # (1, TB) = w_l . x_l
        t = p * s + q[:, l:l + 1] + t
    cross_logit = t[L:L + 1, :]                                     # (1, TB) = wf_c . x_L

    # ---- Deep network (MXU, bf16 operands, f32 accumulate) ----
    # TODO(synk): nn.Dropout(p=0.3) omitted (identity at inference time).
    h = jnp.maximum(r[:h1, :] + c1_ref[...], 0.0)                   # (H1, TB)
    h = jnp.dot(w2_ref[...], h.astype(jnp.bfloat16),
                preferred_element_type=jnp.float32) + c2_ref[...]
    h = jnp.maximum(h, 0.0)                                         # (H2, TB)
    deep_logit = jnp.sum(h * wfd_ref[...], axis=0, keepdims=True)   # (1, TB)

    # ---- dense_final over concat([cross_out, deep_out]) + Sigmoid ('auc') ----
    out_ref[...] = jax.nn.sigmoid(cross_logit + deep_logit + bf_ref[...])


def _choose_tiles(batch, tb_max):
    """Tile count/size: padding <= 127 rows per tile; even tile count (>=2)
    for batches big enough so both v7x TensorCores get work."""
    n_tiles = max(1, pl.cdiv(batch, tb_max))
    if batch > 256:
        n_tiles = max(2, n_tiles)
        n_tiles += n_tiles % 2
    tb = _round_up(pl.cdiv(batch, n_tiles), 128)
    return tb, n_tiles


def dcn_forward(x_int, params, *, layer_num, tb_max=16384):
    """x_int: (B, num_fields) int32 categorical indices -> (B,) probabilities."""
    B, num_fields = x_int.shape
    emb_tables = params["emb_tables"]
    emb_dim = emb_tables[0].shape[1]
    D = num_fields * emb_dim
    w1, w2 = params["w1"], params["w2"]
    H1, H2 = w1.shape[0], w2.shape[0]
    L = layer_num

    TB, n_tiles = _choose_tiles(B, tb_max)
    B_pad = TB * n_tiles

    # Only int32 indices cross HBM; padded rows reuse index 0 and are dropped.
    x_t = jnp.pad(x_int, ((0, B_pad - B), (0, 0))).T.astype(jnp.int32)   # (F, B_pad)

    # ---- Tiny per-call weight fusion (all O(100)-element arrays) ----
    wf_cross = params["wf"][:D]                    # dense_final slice for cross_out
    wf_deep = params["wf"][D:]                     # dense_final slice for deep_out
    # Rows whose dot products with x_l we track: DNN layer 1, cross weights, wf_cross.
    w_stack = jnp.concatenate([w1, params["cross_w"], wf_cross[None, :]], axis=0)
    # Fuse embedding tables into w_stack (kernel does an exact one-hot selection).
    m_tables = [
        (w_stack[:, f * emb_dim:(f + 1) * emb_dim] @ emb_tables[f].T
         ).astype(jnp.bfloat16)                    # (H1+L+1, V_f)
        for f in range(num_fields)
    ]
    v_rows = w_stack[H1:]                                            # (L+1, D)
    q = (v_rows @ params["cross_b"].T).astype(jnp.float32)           # (L+1, L)
    c1 = params["b1"].reshape(H1, 1).astype(jnp.float32)
    w2_b = w2.astype(jnp.bfloat16)
    c2 = params["b2"].reshape(H2, 1).astype(jnp.float32)
    wfd = wf_deep.reshape(H2, 1).astype(jnp.float32)
    bf = params["bf"].reshape(1, 1).astype(jnp.float32)

    weights = tuple(m_tables) + (q, c1, w2_b, c2, wfd, bf)

    def full_spec(arr):
        # Whole (tiny) weight resident in VMEM; constant block index -> no re-fetch.
        return pl.BlockSpec(arr.shape, lambda i: (0, 0))

    out = pl.pallas_call(
        partial(dcn_kernel, num_fields=num_fields, layer_num=L, h1=H1),
        out_shape=jax.ShapeDtypeStruct((1, B_pad), jnp.float32),
        grid=(n_tiles,),
        in_specs=[pl.BlockSpec((num_fields, TB), lambda i: (0, i))]   # streamed indices
                 + [full_spec(w) for w in weights],
        out_specs=pl.BlockSpec((1, TB), lambda i: (0, i)),            # lane-dense output
        compiler_params=pltpu.CompilerParams(
            dimension_semantics=("parallel",),      # shard batch tiles across TCs
            vmem_limit_bytes=32 * 1024 * 1024,      # safe on v7x's 64 MiB VMEM
        ),
    )(x_t, *weights)
    return out[0, :B]                                                # view(-1)


def dcn_reference(x_int, params, *, layer_num):
    """Pure-JAX reference mirroring the torch module (f32 everywhere)."""
    num_fields = x_int.shape[1]
    embeds = jnp.concatenate(
        [params["emb_tables"][f][x_int[:, f]] for f in range(num_fields)], axis=-1)
    x0, x = embeds, embeds
    for l in range(layer_num):
        s = jnp.sum(x * params["cross_w"][l], axis=-1, keepdims=True)
        x = x0 * s + params["cross_b"][l] + x
    h = jax.nn.relu(embeds @ params["w1"].T + params["b1"])
    h = jax.nn.relu(h @ params["w2"].T + params["b2"])
    total = jnp.concatenate([x, h], axis=-1)
    return jax.nn.sigmoid(total @ params["wf"] + params["bf"][0])


def init_params(key, emb_info, emb_dim, hidden_units, layer_num):
    """Deterministic synthetic init matching the torch module's shapes."""
    num_fields = len(emb_info)
    D = num_fields * emb_dim
    h = [D] + list(hidden_units)                 # DCN inserts D at position 0
    keys = jax.random.split(key, num_fields + 8)
    tkeys, wkeys = keys[:num_fields], keys[num_fields:]
    emb_tables = [jax.random.normal(tkeys[i], (v, emb_dim), jnp.float32) * 0.1
                  for i, v in enumerate(emb_info.values())]
    cross_w = jax.random.uniform(wkeys[0], (layer_num, D), jnp.float32)   # torch.rand
    cross_b = jax.random.uniform(wkeys[1], (layer_num, D), jnp.float32)   # torch.rand
    w1 = jax.random.normal(wkeys[2], (h[1], h[0]), jnp.float32) * 0.05
    b1 = jax.random.normal(wkeys[3], (h[1],), jnp.float32) * 0.05
    w2 = jax.random.normal(wkeys[4], (h[2], h[1]), jnp.float32) * 0.05
    b2 = jax.random.normal(wkeys[5], (h[2],), jnp.float32) * 0.05
    wf = jax.random.normal(wkeys[6], (h[0] + h[2],), jnp.float32) * 0.05  # [cross|deep]
    bf = jax.random.normal(wkeys[7], (1,), jnp.float32) * 0.05
    return dict(emb_tables=emb_tables, cross_w=cross_w, cross_b=cross_b,
                w1=w1, b1=b1, w2=w2, b2=b2, wf=wf, bf=bf)


if __name__ == "__main__":
    # Small config consistent with the module:
    #   4 categorical fields, emb_dim=10 -> D=40; hidden_units=[16, 8]; 3 cross layers.
    emb_info = {"a": 100, "b": 50, "c": 30, "d": 20}
    emb_dim = 10
    hidden_units = [16, 8]
    layer_num = 3
    batch = 8

    key = jax.random.PRNGKey(0)
    pkey, xkey = jax.random.split(key)
    params = init_params(pkey, emb_info, emb_dim, hidden_units, layer_num)

    # Integer categorical inputs (B, num_fields), each column within its vocab.
    vocabs = jnp.array(list(emb_info.values()), dtype=jnp.int32)
    x_raw = jax.random.randint(xkey, (batch, len(emb_info)), 0, 10_000, dtype=jnp.int32)
    x_int = x_raw % vocabs[None, :]

    out = dcn_forward(x_int, params, layer_num=layer_num)
    out = jax.block_until_ready(out)

    ref = dcn_reference(x_int, params, layer_num=layer_num)
    assert out.shape == (batch,)
    assert bool(jnp.all(jnp.isfinite(out)))
    assert bool(jnp.all((out >= 0.0) & (out <= 1.0)))
    # bf16 fused-weight tables -> small deviation vs the f32 reference.
    assert float(jnp.max(jnp.abs(out - ref))) < 5e-2
    print("KERNEL_OK")
</pallas_src>

<mosaic_0001>
module attributes {stable_mosaic.version = 11 : i64} {
  func.func @dcn_kernel(%arg0: i32, %arg1: memref<4x128xi32, #tpu.memory_space<vmem>>, %arg2: memref<20x100xbf16, #tpu.memory_space<vmem>>, %arg3: memref<20x50xbf16, #tpu.memory_space<vmem>>, %arg4: memref<20x30xbf16, #tpu.memory_space<vmem>>, %arg5: memref<20x20xbf16, #tpu.memory_space<vmem>>, %arg6: memref<4x3xf32, #tpu.memory_space<vmem>>, %arg7: memref<16x1xf32, #tpu.memory_space<vmem>>, %arg8: memref<8x16xbf16, #tpu.memory_space<vmem>>, %arg9: memref<8x1xf32, #tpu.memory_space<vmem>>, %arg10: memref<8x1xf32, #tpu.memory_space<vmem>>, %arg11: memref<1x1xf32, #tpu.memory_space<vmem>>, %arg12: memref<1x128xf32, #tpu.memory_space<vmem>>) attributes {dimension_semantics = [#tpu.dimension_semantics<parallel>], iteration_bounds = array<i64: 1>, scalar_prefetch = 0 : i64, scratch_operands = 0 : i64, tpu.core_type = #tpu.core_type<tc>, window_params = [{transform_indices = @transform_0, window_bounds = array<i64: 4, 128>}, {pipeline_mode = #tpu.pipeline_mode<synchronous>, transform_indices = @transform_1, window_bounds = array<i64: 20, 100>}, {pipeline_mode = #tpu.pipeline_mode<synchronous>, transform_indices = @transform_2, window_bounds = array<i64: 20, 50>}, {pipeline_mode = #tpu.pipeline_mode<synchronous>, transform_indices = @transform_3, window_bounds = array<i64: 20, 30>}, {pipeline_mode = #tpu.pipeline_mode<synchronous>, transform_indices = @transform_4, window_bounds = array<i64: 20, 20>}, {pipeline_mode = #tpu.pipeline_mode<synchronous>, transform_indices = @transform_5, window_bounds = array<i64: 4, 3>}, {pipeline_mode = #tpu.pipeline_mode<synchronous>, transform_indices = @transform_6, window_bounds = array<i64: 16, 1>}, {pipeline_mode = #tpu.pipeline_mode<synchronous>, transform_indices = @transform_7, window_bounds = array<i64: 8, 16>}, {pipeline_mode = #tpu.pipeline_mode<synchronous>, transform_indices = @transform_8, window_bounds = array<i64: 8, 1>}, {pipeline_mode = #tpu.pipeline_mode<synchronous>, transform_indices = @transform_9, window_bounds = array<i64: 8, 1>}, {pipeline_mode = #tpu.pipeline_mode<synchronous>, transform_indices = @transform_10, window_bounds = array<i64: 1, 1>}, {transform_indices = @transform_11, window_bounds = array<i64: 1, 128>}]} {
    %c0 = arith.constant 0 : index
    %c0_0 = arith.constant 0 : index
    %0 = vector.load %arg1[%c0, %c0_0] : memref<4x128xi32, #tpu.memory_space<vmem>>, vector<1x128xi32>
    %1 = tpu.iota {dimensions = array<i32: 0>} : vector<100x128xi32>
    %2 = vector.broadcast %0 : vector<1x128xi32> to vector<100x128xi32>
    %3 = arith.cmpi eq, %1, %2 : vector<100x128xi32>
    %cst = arith.constant 1.000000e+00 : f32
    %cst_1 = arith.constant 0.000000e+00 : f32
    %4 = vector.broadcast %cst : f32 to vector<100x128xf32>
    %5 = vector.broadcast %cst_1 : f32 to vector<100x128xf32>
    %6 = arith.select %3, %4, %5 : vector<100x128xi1>, vector<100x128xf32>
    %7 = arith.truncf %6 : vector<100x128xf32> to vector<100x128xbf16>
    %c0_2 = arith.constant 0 : index
    %c0_3 = arith.constant 0 : index
    %8 = vector.load %arg2[%c0_2, %c0_3] : memref<20x100xbf16, #tpu.memory_space<vmem>>, vector<20x100xbf16>
    %cst_4 = arith.constant dense<0.000000e+00> : vector<20x128xf32>
    %9 = tpu.matmul %8, %7, %cst_4 {dimension_numbers = #tpu.dot_dimension_numbers<[1], [0], [0], [1], [0, 0, 1, 1], [], []>} : vector<20x100xbf16>, vector<100x128xbf16>, vector<20x128xf32> -> vector<20x128xf32>
    %c1 = arith.constant 1 : index
    %c0_5 = arith.constant 0 : index
    %10 = vector.load %arg1[%c1, %c0_5] : memref<4x128xi32, #tpu.memory_space<vmem>>, vector<1x128xi32>
    %11 = tpu.iota {dimensions = array<i32: 0>} : vector<50x128xi32>
    %12 = vector.broadcast %10 : vector<1x128xi32> to vector<50x128xi32>
    %13 = arith.cmpi eq, %11, %12 : vector<50x128xi32>
    %cst_6 = arith.constant 1.000000e+00 : f32
    %cst_7 = arith.constant 0.000000e+00 : f32
    %14 = vector.broadcast %cst_6 : f32 to vector<50x128xf32>
    %15 = vector.broadcast %cst_7 : f32 to vector<50x128xf32>
    %16 = arith.select %13, %14, %15 : vector<50x128xi1>, vector<50x128xf32>
    %17 = arith.truncf %16 : vector<50x128xf32> to vector<50x128xbf16>
    %c0_8 = arith.constant 0 : index
    %c0_9 = arith.constant 0 : index
    %18 = vector.load %arg3[%c0_8, %c0_9] : memref<20x50xbf16, #tpu.memory_space<vmem>>, vector<20x50xbf16>
    %cst_10 = arith.constant dense<0.000000e+00> : vector<20x128xf32>
    %19 = tpu.matmul %18, %17, %cst_10 {dimension_numbers = #tpu.dot_dimension_numbers<[1], [0], [0], [1], [0, 0, 1, 1], [], []>} : vector<20x50xbf16>, vector<50x128xbf16>, vector<20x128xf32> -> vector<20x128xf32>
    %20 = arith.addf %9, %19 : vector<20x128xf32>
    %c2 = arith.constant 2 : index
    %c0_11 = arith.constant 0 : index
    %21 = vector.load %arg1[%c2, %c0_11] : memref<4x128xi32, #tpu.memory_space<vmem>>, vector<1x128xi32>
    %22 = tpu.iota {dimensions = array<i32: 0>} : vector<30x128xi32>
    %23 = vector.broadcast %21 : vector<1x128xi32> to vector<30x128xi32>
    %24 = arith.cmpi eq, %22, %23 : vector<30x128xi32>
    %cst_12 = arith.constant 1.000000e+00 : f32
    %cst_13 = arith.constant 0.000000e+00 : f32
    %25 = vector.broadcast %cst_12 : f32 to vector<30x128xf32>
    %26 = vector.broadcast %cst_13 : f32 to vector<30x128xf32>
    %27 = arith.select %24, %25, %26 : vector<30x128xi1>, vector<30x128xf32>
    %28 = arith.truncf %27 : vector<30x128xf32> to vector<30x128xbf16>
    %c0_14 = arith.constant 0 : index
    %c0_15 = arith.constant 0 : index
    %29 = vector.load %arg4[%c0_14, %c0_15] : memref<20x30xbf16, #tpu.memory_space<vmem>>, vector<20x30xbf16>
    %cst_16 = arith.constant dense<0.000000e+00> : vector<20x128xf32>
    %30 = tpu.matmul %29, %28, %cst_16 {dimension_numbers = #tpu.dot_dimension_numbers<[1], [0], [0], [1], [0, 0, 1, 1], [], []>} : vector<20x30xbf16>, vector<30x128xbf16>, vector<20x128xf32> -> vector<20x128xf32>
    %31 = arith.addf %20, %30 : vector<20x128xf32>
    %c3 = arith.constant 3 : index
    %c0_17 = arith.constant 0 : index
    %32 = vector.load %arg1[%c3, %c0_17] : memref<4x128xi32, #tpu.memory_space<vmem>>, vector<1x128xi32>
    %33 = tpu.iota {dimensions = array<i32: 0>} : vector<20x128xi32>
    %34 = vector.broadcast %32 : vector<1x128xi32> to vector<20x128xi32>
    %35 = arith.cmpi eq, %33, %34 : vector<20x128xi32>
    %cst_18 = arith.constant 1.000000e+00 : f32
    %cst_19 = arith.constant 0.000000e+00 : f32
    %36 = vector.broadcast %cst_18 : f32 to vector<20x128xf32>
    %37 = vector.broadcast %cst_19 : f32 to vector<20x128xf32>
    %38 = arith.select %35, %36, %37 : vector<20x128xi1>, vector<20x128xf32>
    %39 = arith.truncf %38 : vector<20x128xf32> to vector<20x128xbf16>
    %c0_20 = arith.constant 0 : index
    %c0_21 = arith.constant 0 : index
    %40 = vector.load %arg5[%c0_20, %c0_21] : memref<20x20xbf16, #tpu.memory_space<vmem>>, vector<20x20xbf16>
    %cst_22 = arith.constant dense<0.000000e+00> : vector<20x128xf32>
    %41 = tpu.matmul %40, %39, %cst_22 {dimension_numbers = #tpu.dot_dimension_numbers<[1], [0], [0], [1], [0, 0, 1, 1], [], []>} : vector<20x20xbf16>, vector<20x128xbf16>, vector<20x128xf32> -> vector<20x128xf32>
    %42 = arith.addf %31, %41 : vector<20x128xf32>
    %43 = vector.extract_strided_slice %42 {offsets = [16, 0], sizes = [4, 128], strides = [1, 1]} : vector<20x128xf32> to vector<4x128xf32>
    %c0_23 = arith.constant 0 : index
    %c0_24 = arith.constant 0 : index
    %44 = vector.load %arg6[%c0_23, %c0_24] : memref<4x3xf32, #tpu.memory_space<vmem>>, vector<4x3xf32>
    %45 = vector.extract_strided_slice %43 {offsets = [0, 0], sizes = [1, 128], strides = [1, 1]} : vector<4x128xf32> to vector<1x128xf32>
    %46 = vector.broadcast %45 : vector<1x128xf32> to vector<4x128xf32>
    %47 = arith.mulf %43, %46 : vector<4x128xf32>
    %48 = vector.extract_strided_slice %44 {offsets = [0, 0], sizes = [4, 1], strides = [1, 1]} : vector<4x3xf32> to vector<4x1xf32>
    %49 = vector.broadcast %48 : vector<4x1xf32> to vector<4x128xf32>
    %50 = arith.addf %47, %49 : vector<4x128xf32>
    %51 = arith.addf %50, %43 : vector<4x128xf32>
    %52 = vector.extract_strided_slice %51 {offsets = [1, 0], sizes = [1, 128], strides = [1, 1]} : vector<4x128xf32> to vector<1x128xf32>
    %53 = vector.broadcast %52 : vector<1x128xf32> to vector<4x128xf32>
    %54 = arith.mulf %43, %53 : vector<4x128xf32>
    %55 = vector.extract_strided_slice %44 {offsets = [0, 1], sizes = [4, 1], strides = [1, 1]} : vector<4x3xf32> to vector<4x1xf32>
    %56 = vector.broadcast %55 : vector<4x1xf32> to vector<4x128xf32>
    %57 = arith.addf %54, %56 : vector<4x128xf32>
    %58 = arith.addf %57, %51 : vector<4x128xf32>
    %59 = vector.extract_strided_slice %58 {offsets = [2, 0], sizes = [1, 128], strides = [1, 1]} : vector<4x128xf32> to vector<1x128xf32>
    %60 = vector.broadcast %59 : vector<1x128xf32> to vector<4x128xf32>
    %61 = arith.mulf %43, %60 : vector<4x128xf32>
    %62 = vector.extract_strided_slice %44 {offsets = [0, 2], sizes = [4, 1], strides = [1, 1]} : vector<4x3xf32> to vector<4x1xf32>
    %63 = vector.broadcast %62 : vector<4x1xf32> to vector<4x128xf32>
    %64 = arith.addf %61, %63 : vector<4x128xf32>
    %65 = arith.addf %64, %58 : vector<4x128xf32>
    %66 = vector.extract_strided_slice %65 {offsets = [3, 0], sizes = [1, 128], strides = [1, 1]} : vector<4x128xf32> to vector<1x128xf32>
    %67 = vector.extract_strided_slice %42 {offsets = [0, 0], sizes = [16, 128], strides = [1, 1]} : vector<20x128xf32> to vector<16x128xf32>
    %c0_25 = arith.constant 0 : index
    %c0_26 = arith.constant 0 : index
    %68 = vector.load %arg7[%c0_25, %c0_26] : memref<16x1xf32, #tpu.memory_space<vmem>>, vector<16x1xf32>
    %69 = vector.broadcast %68 : vector<16x1xf32> to vector<16x128xf32>
    %70 = arith.addf %67, %69 : vector<16x128xf32>
    %cst_27 = arith.constant 0.000000e+00 : f32
    %71 = vector.broadcast %cst_27 : f32 to vector<16x128xf32>
    %72 = arith.maximumf %70, %71 : vector<16x128xf32>
    %c0_28 = arith.constant 0 : index
    %c0_29 = arith.constant 0 : index
    %73 = vector.load %arg8[%c0_28, %c0_29] : memref<8x16xbf16, #tpu.memory_space<vmem>>, vector<8x16xbf16>
    %74 = arith.truncf %72 : vector<16x128xf32> to vector<16x128xbf16>
    %cst_30 = arith.constant dense<0.000000e+00> : vector<8x128xf32>
    %75 = tpu.matmul %73, %74, %cst_30 {dimension_numbers = #tpu.dot_dimension_numbers<[1], [0], [0], [1], [0, 0, 1, 1], [], []>} : vector<8x16xbf16>, vector<16x128xbf16>, vector<8x128xf32> -> vector<8x128xf32>
    %c0_31 = arith.constant 0 : index
    %c0_32 = arith.constant 0 : index
    %76 = vector.load %arg9[%c0_31, %c0_32] : memref<8x1xf32, #tpu.memory_space<vmem>>, vector<8x1xf32>
    %77 = vector.broadcast %76 : vector<8x1xf32> to vector<8x128xf32>
    %78 = arith.addf %75, %77 : vector<8x128xf32>
    %cst_33 = arith.constant 0.000000e+00 : f32
    %79 = vector.broadcast %cst_33 : f32 to vector<8x128xf32>
    %80 = arith.maximumf %78, %79 : vector<8x128xf32>
    %c0_34 = arith.constant 0 : index
    %c0_35 = arith.constant 0 : index
    %81 = vector.load %arg10[%c0_34, %c0_35] : memref<8x1xf32, #tpu.memory_space<vmem>>, vector<8x1xf32>
    %82 = vector.broadcast %81 : vector<8x1xf32> to vector<8x128xf32>
    %83 = arith.mulf %80, %82 : vector<8x128xf32>
    %cst_36 = arith.constant dense<0.000000e+00> : vector<128xf32>
    %84 = vector.multi_reduction <add>, %83, %cst_36 [0] : vector<8x128xf32> to vector<128xf32>
    %85 = vector.shape_cast %84 : vector<128xf32> to vector<1x128xf32>
    %86 = arith.addf %66, %85 : vector<1x128xf32>
    %c0_37 = arith.constant 0 : index
    %c0_38 = arith.constant 0 : index
    %87 = vector.load %arg11[%c0_37, %c0_38] : memref<1x1xf32, #tpu.memory_space<vmem>>, vector<1x1xf32>
    %88 = vector.broadcast %87 : vector<1x1xf32> to vector<1x128xf32>
    %89 = arith.addf %86, %88 : vector<1x128xf32>
    %90 = arith.negf %89 : vector<1x128xf32>
    %91 = math.exp %90 : vector<1x128xf32>
    %cst_39 = arith.constant 1.000000e+00 : f32
    %92 = vector.broadcast %cst_39 : f32 to vector<1x128xf32>
    %93 = arith.addf %92, %91 : vector<1x128xf32>
    %94 = arith.divf %92, %93 : vector<1x128xf32>
    %c0_40 = arith.constant 0 : index
    %c0_41 = arith.constant 0 : index
    %95 = vector.load %arg12[%c0_40, %c0_41] : memref<1x128xf32, #tpu.memory_space<vmem>>, vector<1x128xf32>
    tpu.vector_store %arg12[%c0_40, %c0_41], %94 {strides = array<i32>} : memref<1x128xf32, #tpu.memory_space<vmem>>, vector<1x128xf32>,
    return
  }
  func.func @transform_0(%arg0: i32) -> (i32, i32) {
    %c0_i32 = arith.constant 0 : i32
    %c0_i32_0 = arith.constant 0 : i32
    return %c0_i32, %arg0 : i32, i32
  }
  func.func @transform_1(%arg0: i32) -> (i32, i32) {
    %c0_i32 = arith.constant 0 : i32
    %c0_i32_0 = arith.constant 0 : i32
    %c0_i32_1 = arith.constant 0 : i32
    return %c0_i32, %c0_i32_0 : i32, i32
  }
  func.func @transform_2(%arg0: i32) -> (i32, i32) {
    %c0_i32 = arith.constant 0 : i32
    %c0_i32_0 = arith.constant 0 : i32
    %c0_i32_1 = arith.constant 0 : i32
    return %c0_i32, %c0_i32_0 : i32, i32
  }
  func.func @transform_3(%arg0: i32) -> (i32, i32) {
    %c0_i32 = arith.constant 0 : i32
    %c0_i32_0 = arith.constant 0 : i32
    %c0_i32_1 = arith.constant 0 : i32
    return %c0_i32, %c0_i32_0 : i32, i32
  }
  func.func @transform_4(%arg0: i32) -> (i32, i32) {
    %c0_i32 = arith.constant 0 : i32
    %c0_i32_0 = arith.constant 0 : i32
    %c0_i32_1 = arith.constant 0 : i32
    return %c0_i32, %c0_i32_0 : i32, i32
  }
  func.func @transform_5(%arg0: i32) -> (i32, i32) {
    %c0_i32 = arith.constant 0 : i32
    %c0_i32_0 = arith.constant 0 : i32
    %c0_i32_1 = arith.constant 0 : i32
    return %c0_i32, %c0_i32_0 : i32, i32
  }
  func.func @transform_6(%arg0: i32) -> (i32, i32) {
    %c0_i32 = arith.constant 0 : i32
    %c0_i32_0 = arith.constant 0 : i32
    %c0_i32_1 = arith.constant 0 : i32
    return %c0_i32, %c0_i32_0 : i32, i32
  }
  func.func @transform_7(%arg0: i32) -> (i32, i32) {
    %c0_i32 = arith.constant 0 : i32
    %c0_i32_0 = arith.constant 0 : i32
    %c0_i32_1 = arith.constant 0 : i32
    return %c0_i32, %c0_i32_0 : i32, i32
  }
  func.func @transform_8(%arg0: i32) -> (i32, i32) {
    %c0_i32 = arith.constant 0 : i32
    %c0_i32_0 = arith.constant 0 : i32
    %c0_i32_1 = arith.constant 0 : i32
    return %c0_i32, %c0_i32_0 : i32, i32
  }
  func.func @transform_9(%arg0: i32) -> (i32, i32) {
    %c0_i32 = arith.constant 0 : i32
    %c0_i32_0 = arith.constant 0 : i32
    %c0_i32_1 = arith.constant 0 : i32
    return %c0_i32, %c0_i32_0 : i32, i32
  }
  func.func @transform_10(%arg0: i32) -> (i32, i32) {
    %c0_i32 = arith.constant 0 : i32
    %c0_i32_0 = arith.constant 0 : i32
    %c0_i32_1 = arith.constant 0 : i32
    return %c0_i32, %c0_i32_0 : i32, i32
  }
  func.func @transform_11(%arg0: i32) -> (i32, i32) {
    %c0_i32 = arith.constant 0 : i32
    %c0_i32_0 = arith.constant 0 : i32
    return %c0_i32, %arg0 : i32, i32
  }
}

</mosaic_0001>

<llo_original>
// kernel: tpu_custom_call.1
$region0: #{tpu_custom_call.1}
  #allocation0 [shape = 'u32[]', space=smem, size = 0x4, offset = 0x4, fixed_abs, tag = 'smem constant byte address 0x4 - core index']
  #allocation1 [shape = 'u32[144,128]{1,0:T(1,128)}', space=vmem, size = 0x12000, scoped, tag = 'internal scratch']
  #allocation2 [shape = 'f32[1,1]{1,0:T(1,128)S(1)}', space=vmem, size = 0x200, scoped, tag = 'scoped memory for tpu_custom_call.1']
  %s0 = inlined_call_operand.hbm [shape: s32[4,128], index: 0, kind: input, shape index: {}]
  %s1 = inlined_call_operand.vmem [shape: bf16[20,100], index: 1, kind: input, shape index: {}]
  %s2 = inlined_call_operand.vmem [shape: bf16[20,50], index: 2, kind: input, shape index: {}]
  %s3 = inlined_call_operand.vmem [shape: bf16[20,30], index: 3, kind: input, shape index: {}]
  %s4 = inlined_call_operand.hbm [shape: bf16[20,20], index: 4, kind: input, shape index: {}]
  %s5 = inlined_call_operand.vmem [shape: f32[4,3], index: 5, kind: input, shape index: {}]
  %s6 = inlined_call_operand.vmem [shape: f32[16,1], index: 6, kind: input, shape index: {}]
  %s7 = inlined_call_operand.vmem [shape: bf16[8,16], index: 7, kind: input, shape index: {}]
  %s8 = inlined_call_operand.vmem [shape: f32[8,1], index: 8, kind: input, shape index: {}]
  %s9 = inlined_call_operand.vmem [shape: f32[8,1], index: 9, kind: input, shape index: {}]
  %s10 = inlined_call_operand.<no memory space> [shape: f32[1,1], index: 10, kind: input, shape index: {}]
  %s11 = inlined_call_operand.hbm [shape: f32[1,128], index: 11, kind: output, shape index: {}]
  %s12 = sld [smem:[#allocation0]]
  $region62: #{tpu_custom_call.1} parent=0
    _
  %s14 = ssub.s32 1, %s12
  %s15 = scalar_select 0, %s14, %s12
  %v16 = vstv %s10
  %17 = vst [vmem:[#allocation2] sm:$0x1] %v16
  $region1: #{tpu_custom_call.1} parent=0
    #allocation3 [shape = 'u8[2048]{0}', space=vmem, size = 0x800, scoped, tag = 'input window, operand 0, single buffered']
    #allocation4 [shape = 's32[1]{0}', space=sflag, size = 0x4, scoped, tag = 'scoped memory for tpu_custom_call.1']
    #allocation5 [shape = 's32[1]{0}', space=sflag, size = 0x4, scoped, tag = 'scoped memory for tpu_custom_call.1']
    #allocation6 [shape = 'u8[6144]{0}', space=vmem, size = 0x1800, scoped, tag = 'input window, operand 4, single buffered']
    #allocation7 [shape = 's32[1]{0}', space=sflag, size = 0x4, scoped, tag = 'scoped memory for tpu_custom_call.1']
    #allocation8 [shape = 'u8[512]{0}', space=vmem, size = 0x400, scoped, tag = 'output window, operand 0, single buffered']
    %18 = vsyncpa [#allocation4], 0
    %19 = vsyncpa [#allocation7], 0
    %20 = vsyncpa [#allocation5], 0
    // Predicated region
    $region2: #{tpu_custom_call.1} parent=1 // pred_check
      _
    $region3: #{tpu_custom_call.1} parent=1 // pred_check_branch
      %22 = sbr.rel (0) target = $region5
    $region4: #{tpu_custom_call.1} parent=1 // pred_region
      %s24 = ssub.s32 64, 64
      %25 = vsyncadd [#allocation4], %s24
      %s27 = sshll.u32 [#allocation3], 4
      %s28 = int_to_ptr.vmem [resolvable:$true] %s27
      %30 = dma.hbm_to_vmem [thread:$0]  %s0, 64, %s28, [#allocation4]
    $region5: #{tpu_custom_call.1} parent=1 // pred_fallthru
      _
    // Predicated region
    $region6: #{tpu_custom_call.1} parent=1 // pred_check
      _
    $region7: #{tpu_custom_call.1} parent=1 // pred_check_branch
      %32 = sbr.rel (0) target = $region9
    $region8: #{tpu_custom_call.1} parent=1 // pred_region
      _
    $region9: #{tpu_custom_call.1} parent=1 // pred_fallthru
      _
    // Predicated region
    $region10: #{tpu_custom_call.1} parent=1 // pred_check
      _
    $region11: #{tpu_custom_call.1} parent=1 // pred_check_branch
      %34 = sbr.rel (0) target = $region13
    $region12: #{tpu_custom_call.1} parent=1 // pred_region
      _
    $region13: #{tpu_custom_call.1} parent=1 // pred_fallthru
      _
    // Predicated region
    $region14: #{tpu_custom_call.1} parent=1 // pred_check
      _
    $region15: #{tpu_custom_call.1} parent=1 // pred_check_branch
      %36 = sbr.rel (0) target = $region17
    $region16: #{tpu_custom_call.1} parent=1 // pred_region
      _
    $region17: #{tpu_custom_call.1} parent=1 // pred_fallthru
      _
    // Predicated region
    $region18: #{tpu_custom_call.1} parent=1 // pred_check
      _
    $region19: #{tpu_custom_call.1} parent=1 // pred_check_branch
      %38 = sbr.rel (0) target = $region21
    $region20: #{tpu_custom_call.1} parent=1 // pred_region
      %s40 = ssub.s32 192, 192
      %41 = vsyncadd [#allocation7], %s40
      %s42 = sshll.u32 [#allocation6], 4
      %s43 = int_to_ptr.vmem [resolvable:$true] %s42
      %48 = dma.hbm_to_vmem [thread:$0]  %s4, 192, %s43, [#allocation7], 64, 64, 4
    $region21: #{tpu_custom_call.1} parent=1 // pred_fallthru
      _
    // Predicated region
    $region22: #{tpu_custom_call.1} parent=1 // pred_check
      _
    $region23: #{tpu_custom_call.1} parent=1 // pred_check_branch
      %50 = sbr.rel (0) target = $region25
    $region24: #{tpu_custom_call.1} parent=1 // pred_region
      _
    $region25: #{tpu_custom_call.1} parent=1 // pred_fallthru
      _
    // Predicated region
    $region26: #{tpu_custom_call.1} parent=1 // pred_check
      _
    $region27: #{tpu_custom_call.1} parent=1 // pred_check_branch
      %52 = sbr.rel (0) target = $region29
    $region28: #{tpu_custom_call.1} parent=1 // pred_region
      _
    $region29: #{tpu_custom_call.1} parent=1 // pred_fallthru
      _
    // Predicated region
    $region30: #{tpu_custom_call.1} parent=1 // pred_check
      _
    $region31: #{tpu_custom_call.1} parent=1 // pred_check_branch
      %54 = sbr.rel (0) target = $region33
    $region32: #{tpu_custom_call.1} parent=1 // pred_region
      _
    $region33: #{tpu_custom_call.1} parent=1 // pred_fallthru
      _
    // Predicated region
    $region34: #{tpu_custom_call.1} parent=1 // pred_check
      _
    $region35: #{tpu_custom_call.1} parent=1 // pred_check_branch
      %56 = sbr.rel (0) target = $region37
    $region36: #{tpu_custom_call.1} parent=1 // pred_region
      _
    $region37: #{tpu_custom_call.1} parent=1 // pred_fallthru
      _
    // Predicated region
    $region38: #{tpu_custom_call.1} parent=1 // pred_check
      _
    $region39: #{tpu_custom_call.1} parent=1 // pred_check_branch
      %58 = sbr.rel (0) target = $region41
    $region40: #{tpu_custom_call.1} parent=1 // pred_region
      _
    $region41: #{tpu_custom_call.1} parent=1 // pred_fallthru
      _
    // Predicated region
    $region42: #{tpu_custom_call.1} parent=1 // pred_check
      _
    $region43: #{tpu_custom_call.1} parent=1 // pred_check_branch
      %60 = sbr.rel (0) target = $region45
    $region44: #{tpu_custom_call.1} parent=1 // pred_region
      _
    $region45: #{tpu_custom_call.1} parent=1 // pred_fallthru
      _
    // Predicated region
    $region46: #{tpu_custom_call.1} parent=1 // pred_check
      _
    $region47: #{tpu_custom_call.1} parent=1 // pred_check_branch
      %62 = sbr.rel (0) target = $region49
    $region48: #{tpu_custom_call.1} parent=1 // pred_region
      %63 = dma.done [#allocation4], 64
    $region49: #{tpu_custom_call.1} parent=1 // pred_fallthru
      _
    // Predicated region
    $region50: #{tpu_custom_call.1} parent=1 // pred_check
      _
    $region51: #{tpu_custom_call.1} parent=1 // pred_check_branch
      %65 = sbr.rel (0) target = $region53
    $region52: #{tpu_custom_call.1} parent=1 // pred_region
      %66 = dma.done [#allocation7], 192
    $region53: #{tpu_custom_call.1} parent=1 // pred_fallthru
      _
    %v68 = vld [vmem:[#allocation3] sm:$0x1]
    %v69 = vlaneseq
    %v70 = vshrl.u32 %v69, 7
    %v71 = vadd.s32 %v70, 8
    %v72 = vadd.s32 %v70, 16
    %v73 = vadd.s32 %v70, 24
    %v74 = vadd.s32 %v70, 32
    %v75 = vadd.s32 %v70, 40
    %v76 = vadd.s32 %v70, 48
    %v77 = vadd.s32 %v70, 56
    %v78 = vadd.s32 %v70, 64
    %v79 = vadd.s32 %v70, 72
    %v80 = vadd.s32 %v70, 80
    %v81 = vadd.s32 %v70, 88
    %v82 = vadd.s32 %v70, 96
    %v83 = vlaneseq
    %v84 = vshrl.u32 %v83, 7
    %v85 = vsub.s32 0, %v84
    %v86 = vrot.slane %v68, %v85
    %vm87 = vcmp.eq.s32.totalorder %v70, %v86
    %vm88 = vcmp.eq.s32.totalorder %v71, %v86
    %vm89 = vcmp.eq.s32.totalorder %v72, %v86
    %vm90 = vcmp.eq.s32.totalorder %v73, %v86
    %vm91 = vcmp.eq.s32.totalorder %v74, %v86
    %vm92 = vcmp.eq.s32.totalorder %v75, %v86
    %vm93 = vcmp.eq.s32.totalorder %v76, %v86
    %vm94 = vcmp.eq.s32.totalorder %v77, %v86
    %vm95 = vcmp.eq.s32.totalorder %v78, %v86
    %vm96 = vcmp.eq.s32.totalorder %v79, %v86
    %vm97 = vcmp.eq.s32.totalorder %v80, %v86
    %vm98 = vcmp.eq.s32.totalorder %v81, %v86
    %vm99 = vcmp.eq.s32.totalorder %v82, %v86
    %v100 = vsel %vm87, 1.0, 0.0
    %v101 = vsel %vm88, 1.0, 0.0
    %v102 = vsel %vm89, 1.0, 0.0
    %v103 = vsel %vm90, 1.0, 0.0
    %v104 = vsel %vm91, 1.0, 0.0
    %v105 = vsel %vm92, 1.0, 0.0
    %v106 = vsel %vm93, 1.0, 0.0
    %v107 = vsel %vm94, 1.0, 0.0
    %v108 = vsel %vm95, 1.0, 0.0
    %v109 = vsel %vm96, 1.0, 0.0
    %v110 = vsel %vm97, 1.0, 0.0
    %v111 = vsel %vm98, 1.0, 0.0
    %v112 = vsel %vm99, 1.0, 0.0
    %v113 = vpack.c.bf16 %v101, %v100
    %v114 = vpack.c.bf16 %v103, %v102
    %v115 = vpack.c.bf16 %v105, %v104
    %v116 = vpack.c.bf16 %v107, %v106
    %v117 = vpack.c.bf16 %v109, %v108
    %v118 = vpack.c.bf16 %v111, %v110
    %v119 = vpack.c.bf16 %v112, %v112
    %v120 = vld [vmem:[%s1] sm:$0xf]
    %v121 = vld [vmem:[%s1 + $0x4] sm:$0xf]
    %v122 = vld [vmem:[%s1 + $0x8] sm:$0x3]
    %v123 = vld [vmem:[#allocation3 + $0x1] sm:$0x1]
    %v124 = vlaneseq
    %v125 = vshrl.u32 %v124, 7
    %v126 = vsub.s32 0, %v125
    %v127 = vrot.slane %v123, %v126
    %vm128 = vcmp.eq.s32.totalorder %v70, %v127
    %vm129 = vcmp.eq.s32.totalorder %v71, %v127
    %vm130 = vcmp.eq.s32.totalorder %v72, %v127
    %vm131 = vcmp.eq.s32.totalorder %v73, %v127
    %vm132 = vcmp.eq.s32.totalorder %v74, %v127
    %vm133 = vcmp.eq.s32.totalorder %v75, %v127
    %vm134 = vcmp.eq.s32.totalorder %v76, %v127
    %v135 = vsel %vm128, 1.0, 0.0
    %v136 = vsel %vm129, 1.0, 0.0
    %v137 = vsel %vm130, 1.0, 0.0
    %v138 = vsel %vm131, 1.0, 0.0
    %v139 = vsel %vm132, 1.0, 0.0
    %v140 = vsel %vm133, 1.0, 0.0
    %v141 = vsel %vm134, 1.0, 0.0
    %v142 = vpack.c.bf16 %v136, %v135
    %v143 = vpack.c.bf16 %v138, %v137
    %v144 = vpack.c.bf16 %v140, %v139
    %v145 = vpack.c.bf16 %v141, %v141
    %v146 = vld [vmem:[%s2] sm:$0xf]
    %v147 = vld [vmem:[%s2 + $0x4] sm:$0xf]
    %v148 = vld [vmem:[%s2 + $0x8] sm:$0x3]
    %v152 = vunpack.c.l.b16 %v146
    %v153 = vunpack.c.l.b16 %v147
    %v154 = vunpack.c.l.b16 %v148
    %v155 = vpack.c.b16 %v153, %v152
    %v156 = vpack.c.b16 %v154, %v154
    %vm157 = vcmask 408576
    %v159 = vsel %vm157, %v155, 0
    %v162 = vsel %vm157, %v156, 0
    %vm164 = vcmask 1040384
    %v166 = vsel %vm164, %v145, 0
    %168 = vmatprep.subr.bf16.mxu0 0
    %169 = vmatpush1.bf16.msra.mxu0 0
    %170 = vmatprep.subr.bf16.mxu0 0
    %171 = vmatpush1.bf16.msra.mxu0 0
    %172 = vmatprep.subr.bf16.mxu0 0
    %173 = vmatpush1.bf16.msra.mxu0 0
    %174 = vmatprep.subr.bf16.mxu0 0
    %175 = vmatpush1.bf16.msra.mxu0 0
    %176 = vmatprep.subr.bf16.mxu0 0
    %177 = vmatpush1.bf16.msra.mxu0 %v166
    %178 = vmatprep.subr.bf16.mxu0 0
    %179 = vmatpush1.bf16.msra.mxu0 %v144
    %180 = vmatprep.subr.bf16.mxu0 0
    %181 = vmatpush1.bf16.msra.mxu0 %v143
    %182 = vmatprep.subr.bf16.mxu0 0
    %183 = vmatpush1.bf16.msra.mxu0 %v142
    %184 = vmatprep.subr.bf16.mxu0 0
    %185 = vmatpush2.bf16.msra.mxu0 0
    %186 = vmatprep.subr.bf16.mxu0 0
    %187 = vmatpush2.bf16.msra.mxu0 0
    %188 = vmatprep.subr.bf16.mxu0 0
    %189 = vmatpush2.bf16.msra.mxu0 0
    %190 = vmatprep.subr.bf16.mxu0 0
    %191 = vmatpush2.bf16.msra.mxu0 0
    %192 = vmatprep.subr.bf16.mxu0 0
    %193 = vmatpush2.bf16.msra.mxu0 0
    %194 = vmatprep.subr.bf16.mxu0 0
    %195 = vmatpush2.bf16.msra.mxu0 0
    %196 = vmatprep.subr.bf16.mxu0 0
    %197 = vmatpush2.bf16.msra.mxu0 0
    %198 = vmatprep.subr.bf16.mxu0 0
    %199 = vmatpush2.bf16.msra.mxu0 0
    %200 = vmatprep.mubr.bf16.mxu0 0
    %201 = vmatmul.mubr.bf16.gmra.mxu0 %v159
    %v202 = vpop.f32.mrf.mxu0
    %v203 = vadd.f32 0.0, %v202
    %v204 = vpop.f32.mrf.mxu0
    %v205 = vpop.f32.mrf.mxu0
    %v206 = vadd.f32 0.0, %v205
    %v207 = vpop.f32.mrf.mxu0
    %208 = vmatprep.mubr.bf16.mxu0 0
    %209 = vmatmul.mubr.bf16.gmra.mxu0 %v162
    %v210 = vpop.f32.mrf.mxu0
    %v211 = vadd.f32 0.0, %v210
    %v212 = vpop.f32.mrf.mxu0
    %v213 = vpop.f32.mrf.mxu0
    %v214 = vpop.f32.mrf.mxu0
    %215 = vdwg.mxu0
    %v219 = vunpack.c.l.b16 %v120
    %v220 = vunpack.c.l.b16 %v121
    %v221 = vunpack.c.l.b16 %v122
    %v222 = vpack.c.b16 %v220, %v219
    %v223 = vpack.c.b16 %v221, %v221
    %vm224 = vcmask 818176
    %v226 = vsel %vm224, %v222, 0
    %v229 = vsel %vm224, %v223, 0
    %vm231 = vcmask 1041408
    %v233 = vsel %vm231, %v119, 0
    %235 = vmatprep.subr.bf16.mxu0 0
    %236 = vmatpush1.bf16.msra.mxu0 0
    %237 = vmatprep.subr.bf16.mxu0 0
    %238 = vmatpush1.bf16.msra.mxu0 %v233
    %239 = vmatprep.subr.bf16.mxu0 0
    %240 = vmatpush1.bf16.msra.mxu0 %v118
    %241 = vmatprep.subr.bf16.mxu0 0
    %242 = vmatpush1.bf16.msra.mxu0 %v117
    %243 = vmatprep.subr.bf16.mxu0 0
    %244 = vmatpush1.bf16.msra.mxu0 %v116
    %245 = vmatprep.subr.bf16.mxu0 0
    %246 = vmatpush1.bf16.msra.mxu0 %v115
    %247 = vmatprep.subr.bf16.mxu0 0
    %248 = vmatpush1.bf16.msra.mxu0 %v114
    %249 = vmatprep.subr.bf16.mxu0 0
    %250 = vmatpush1.bf16.msra.mxu0 %v113
    %251 = vmatprep.subr.bf16.mxu0 0
    %252 = vmatpush2.bf16.msra.mxu0 0
    %253 = vmatprep.subr.bf16.mxu0 0
    %254 = vmatpush2.bf16.msra.mxu0 0
    %255 = vmatprep.subr.bf16.mxu0 0
    %256 = vmatpush2.bf16.msra.mxu0 0
    %257 = vmatprep.subr.bf16.mxu0 0
    %258 = vmatpush2.bf16.msra.mxu0 0
    %259 = vmatprep.subr.bf16.mxu0 0
    %260 = vmatpush2.bf16.msra.mxu0 0
    %261 = vmatprep.subr.bf16.mxu0 0
    %262 = vmatpush2.bf16.msra.mxu0 0
    %263 = vmatprep.subr.bf16.mxu0 0
    %264 = vmatpush2.bf16.msra.mxu0 0
    %265 = vmatprep.subr.bf16.mxu0 0
    %266 = vmatpush2.bf16.msra.mxu0 0
    %267 = vmatprep.mubr.bf16.mxu0 0
    %268 = vmatmul.mubr.bf16.gmra.mxu0 %v226
    %v269 = vpop.f32.mrf.mxu0
    %v270 = vadd.f32 %v203, %v269
    %v271 = vpop.f32.mrf.mxu0
    %v272 = vpop.f32.mrf.mxu0
    %v273 = vadd.f32 %v206, %v272
    %v274 = vpop.f32.mrf.mxu0
    %275 = vmatprep.mubr.bf16.mxu0 0
    %276 = vmatmul.mubr.bf16.gmra.mxu0 %v229
    %v277 = vpop.f32.mrf.mxu0
    %v278 = vadd.f32 %v211, %v277
    %v279 = vpop.f32.mrf.mxu0
    %v280 = vpop.f32.mrf.mxu0
    %v281 = vpop.f32.mrf.mxu0
    %282 = vdwg.mxu0
    %v283 = vld [vmem:[#allocation3 + $0x2] sm:$0x1]
    %v284 = vlaneseq
    %v285 = vshrl.u32 %v284, 7
    %v286 = vsub.s32 0, %v285
    %v287 = vrot.slane %v283, %v286
    %vm288 = vcmp.eq.s32.totalorder %v70, %v287
    %vm289 = vcmp.eq.s32.totalorder %v71, %v287
    %vm290 = vcmp.eq.s32.totalorder %v72, %v287
    %vm291 = vcmp.eq.s32.totalorder %v73, %v287
    %v292 = vsel %vm288, 1.0, 0.0
    %v293 = vsel %vm289, 1.0, 0.0
    %v294 = vsel %vm290, 1.0, 0.0
    %v295 = vsel %vm291, 1.0, 0.0
    %v296 = vpack.c.bf16 %v293, %v292
    %v297 = vpack.c.bf16 %v295, %v294
    %v298 = vld [vmem:[%s3] sm:$0xf]
    %v299 = vld [vmem:[%s3 + $0x4] sm:$0xf]
    %v300 = vld [vmem:[%s3 + $0x8] sm:$0x3]
    %v304 = vunpack.c.l.b16 %v298
    %v305 = vunpack.c.l.b16 %v299
    %v306 = vunpack.c.l.b16 %v300
    %v307 = vpack.c.b16 %v305, %v304
    %v308 = vpack.c.b16 %v306, %v306
    %vm309 = vcmask 244736
    %v311 = vsel %vm309, %v307, 0
    %v314 = vsel %vm309, %v308, 0
    %vm316 = vcmask 1046528
    %v318 = vsel %vm316, %v297, 0
    %320 = vmatprep.subr.bf16.mxu0 0
    %321 = vmatpush1.bf16.msra.mxu0 0
    %322 = vmatprep.subr.bf16.mxu0 0
    %323 = vmatpush1.bf16.msra.mxu0 0
    %324 = vmatprep.subr.bf16.mxu0 0
    %325 = vmatpush1.bf16.msra.mxu0 0
    %326 = vmatprep.subr.bf16.mxu0 0
    %327 = vmatpush1.bf16.msra.mxu0 0
    %328 = vmatprep.subr.bf16.mxu0 0
    %329 = vmatpush1.bf16.msra.mxu0 0
    %330 = vmatprep.subr.bf16.mxu0 0
    %331 = vmatpush1.bf16.msra.mxu0 0
    %332 = vmatprep.subr.bf16.mxu0 0
    %333 = vmatpush1.bf16.msra.mxu0 %v318
    %334 = vmatprep.subr.bf16.mxu0 0
    %335 = vmatpush1.bf16.msra.mxu0 %v296
    %336 = vmatprep.subr.bf16.mxu0 0
    %337 = vmatpush2.bf16.msra.mxu0 0
    %338 = vmatprep.subr.bf16.mxu0 0
    %339 = vmatpush2.bf16.msra.mxu0 0
    %340 = vmatprep.subr.bf16.mxu0 0
    %341 = vmatpush2.bf16.msra.mxu0 0
    %342 = vmatprep.subr.bf16.mxu0 0
    %343 = vmatpush2.bf16.msra.mxu0 0
    %344 = vmatprep.subr.bf16.mxu0 0
    %345 = vmatpush2.bf16.msra.mxu0 0
    %346 = vmatprep.subr.bf16.mxu0 0
    %347 = vmatpush2.bf16.msra.mxu0 0
    %348 = vmatprep.subr.bf16.mxu0 0
    %349 = vmatpush2.bf16.msra.mxu0 0
    %350 = vmatprep.subr.bf16.mxu0 0
    %351 = vmatpush2.bf16.msra.mxu0 0
    %352 = vmatprep.mubr.bf16.mxu0 0
    %353 = vmatmul.mubr.bf16.gmra.mxu0 %v311
    %v354 = vpop.f32.mrf.mxu0
    %v355 = vadd.f32 0.0, %v354
    %v356 = vpop.f32.mrf.mxu0
    %v357 = vpop.f32.mrf.mxu0
    %v358 = vadd.f32 0.0, %v357
    %v359 = vpop.f32.mrf.mxu0
    %360 = vmatprep.mubr.bf16.mxu0 0
    %361 = vmatmul.mubr.bf16.gmra.mxu0 %v314
    %v362 = vpop.f32.mrf.mxu0
    %v363 = vadd.f32 0.0, %v362
    %v364 = vpop.f32.mrf.mxu0
    %v365 = vpop.f32.mrf.mxu0
    %v366 = vpop.f32.mrf.mxu0
    %367 = vdwg.mxu0
    %v368 = vadd.f32 %v270, %v355
    %v369 = vadd.f32 %v273, %v358
    %v370 = vadd.f32 %v278, %v363
    %v371 = vld [vmem:[#allocation3 + $0x3] sm:$0x1]
    %v372 = vlaneseq
    %v373 = vshrl.u32 %v372, 7
    %v374 = vsub.s32 0, %v373
    %v375 = vrot.slane %v371, %v374
    %vm376 = vcmp.eq.s32.totalorder %v70, %v375
    %vm377 = vcmp.eq.s32.totalorder %v71, %v375
    %vm378 = vcmp.eq.s32.totalorder %v72, %v375
    %v379 = vsel %vm376, 1.0, 0.0
    %v380 = vsel %vm377, 1.0, 0.0
    %v381 = vsel %vm378, 1.0, 0.0
    %v382 = vpack.c.bf16 %v380, %v379
    %v383 = vpack.c.bf16 %v381, %v381
    %v384 = vld [vmem:[#allocation6] sm:$0xf]
    %v385 = vld [vmem:[#allocation6 + $0x4] sm:$0xf]
    %v386 = vld [vmem:[#allocation6 + $0x8] sm:$0x3]
    %v390 = vunpack.c.l.b16 %v384
    %v391 = vunpack.c.l.b16 %v385
    %v392 = vunpack.c.l.b16 %v386
    %v393 = vpack.c.b16 %v391, %v390
    %v394 = vpack.c.b16 %v392, %v392
    %vm395 = vcmask 162816
    %v397 = vsel %vm395, %v393, 0
    %v400 = vsel %vm395, %v394, 0
    %v403 = vsel %vm231, %v383, 0
    %405 = vmatprep.subr.bf16.mxu0 0
    %406 = vmatpush1.bf16.msra.mxu0 0
    %407 = vmatprep.subr.bf16.mxu0 0
    %408 = vmatpush1.bf16.msra.mxu0 0
    %409 = vmatprep.subr.bf16.mxu0 0
    %410 = vmatpush1.bf16.msra.mxu0 0
    %411 = vmatprep.subr.bf16.mxu0 0
    %412 = vmatpush1.bf16.msra.mxu0 0
    %413 = vmatprep.subr.bf16.mxu0 0
    %414 = vmatpush1.bf16.msra.mxu0 0
    %415 = vmatprep.subr.bf16.mxu0 0
    %416 = vmatpush1.bf16.msra.mxu0 0
    %417 = vmatprep.subr.bf16.mxu0 0
    %418 = vmatpush1.bf16.msra.mxu0 %v403
    %419 = vmatprep.subr.bf16.mxu0 0
    %420 = vmatpush1.bf16.msra.mxu0 %v382
    %421 = vmatprep.subr.bf16.mxu0 0
    %422 = vmatpush2.bf16.msra.mxu0 0
    %423 = vmatprep.subr.bf16.mxu0 0
    %424 = vmatpush2.bf16.msra.mxu0 0
    %425 = vmatprep.subr.bf16.mxu0 0
    %426 = vmatpush2.bf16.msra.mxu0 0
    %427 = vmatprep.subr.bf16.mxu0 0
    %428 = vmatpush2.bf16.msra.mxu0 0
    %429 = vmatprep.subr.bf16.mxu0 0
    %430 = vmatpush2.bf16.msra.mxu0 0
    %431 = vmatprep.subr.bf16.mxu0 0
    %432 = vmatpush2.bf16.msra.mxu0 0
    %433 = vmatprep.subr.bf16.mxu0 0
    %434 = vmatpush2.bf16.msra.mxu0 0
    %435 = vmatprep.subr.bf16.mxu0 0
    %436 = vmatpush2.bf16.msra.mxu0 0
    %437 = vmatprep.mubr.bf16.mxu0 0
    %438 = vmatmul.mubr.bf16.gmra.mxu0 %v397
    %v439 = vpop.f32.mrf.mxu0
    %v440 = vadd.f32 0.0, %v439
    %v441 = vpop.f32.mrf.mxu0
    %v442 = vpop.f32.mrf.mxu0
    %v443 = vadd.f32 0.0, %v442
    %v444 = vpop.f32.mrf.mxu0
    %445 = vmatprep.mubr.bf16.mxu0 0
    %446 = vmatmul.mubr.bf16.gmra.mxu0 %v400
    %v447 = vpop.f32.mrf.mxu0
    %v448 = vadd.f32 0.0, %v447
    %v449 = vpop.f32.mrf.mxu0
    %v450 = vpop.f32.mrf.mxu0
    %v451 = vpop.f32.mrf.mxu0
    %452 = vdwg.mxu0
    %v453 = vadd.f32 %v368, %v440
    %v454 = vadd.f32 %v369, %v443
    %v455 = vadd.f32 %v370, %v448
    %v456 = vld [vmem:[%s5] sm:$0xf]
    %v457 = vlaneseq
    %v458 = vshrl.u32 %v457, 7
    %v459 = vsub.s32 0, %v458
    %v460 = vrot.slane %v455, %v459
    %v461 = vmul.f32 %v455, %v460
    %463 = vset.pattern.permute.xlu0 0
    %464 = vperm.xlu0 %463, %v456
    %v465 = vpop.permute.xlu0 %464
    %v467 = vadd.f32 %v461, %v465
    %v468 = vadd.f32 %v467, %v455
    %v469 = vlaneseq
    %v470 = vshrl.u32 %v469, 7
    %v471 = vsub.s32 1, %v470
    %v472 = vrot.slane %v468, %v471
    %v473 = vmul.f32 %v455, %v472
    %474 = vset.pattern.permute.xlu0 1
    %475 = vperm.xlu0 %474, %v456
    %v476 = vpop.permute.xlu0 %475
    %v478 = vadd.f32 %v473, %v476
    %v479 = vadd.f32 %v478, %v468
    %v480 = vlaneseq
    %v481 = vshrl.u32 %v480, 7
    %v482 = vsub.s32 2, %v481
    %v483 = vrot.slane %v479, %v482
    %v484 = vmul.f32 %v455, %v483
    %485 = vset.pattern.permute.xlu0 2
    %486 = vperm.xlu0 %485, %v456
    %v487 = vpop.permute.xlu0 %486
    %v489 = vadd.f32 %v484, %v487
    %v490 = vadd.f32 %v489, %v479
    %v491 = vld [vmem:[%s6] sm:$0xff]
    %v492 = vld [vmem:[%s6 + $0x8] sm:$0xff]
    %494 = vset.pattern.permute.xlu0 0
    %495 = vperm.xlu0 %494, %v491
    %v496 = vpop.permute.xlu0 %495
    %499 = vset.pattern.permute.xlu0 0
    %500 = vperm.xlu0 %499, %v492
    %v501 = vpop.permute.xlu0 %500
    %v503 = vadd.f32 %v453, %v496
    %v504 = vadd.f32 %v454, %v501
    %v505 = vmax.f32 %v503, 0.0
    %v506 = vmax.f32 %v504, 0.0
    %v507 = vld [vmem:[%s7] sm:$0xf]
    %v508 = vpack.c.bf16 %v506, %v505
    %v509 = vld [vmem:[%s8] sm:$0xff]
    %511 = vset.pattern.permute.xlu0 0
    %512 = vperm.xlu0 %511, %v509
    %v513 = vpop.permute.xlu0 %512
    %vm515 = vcmask 130048
    %v517 = vsel %vm515, %v507, 0
    %519 = vmatprep.subr.bf16.mxu0 0
    %520 = vmatpush1.bf16.msra.mxu0 0
    %521 = vmatprep.subr.bf16.mxu0 0
    %522 = vmatpush1.bf16.msra.mxu0 0
    %523 = vmatprep.subr.bf16.mxu0 0
    %524 = vmatpush1.bf16.msra.mxu0 0
    %525 = vmatprep.subr.bf16.mxu0 0
    %526 = vmatpush1.bf16.msra.mxu0 0
    %527 = vmatprep.subr.bf16.mxu0 0
    %528 = vmatpush1.bf16.msra.mxu0 0
    %529 = vmatprep.subr.bf16.mxu0 0
    %530 = vmatpush1.bf16.msra.mxu0 0
    %531 = vmatprep.subr.bf16.mxu0 0
    %532 = vmatpush1.bf16.msra.mxu0 0
    %533 = vmatprep.subr.bf16.mxu0 0
    %534 = vmatpush1.bf16.msra.mxu0 %v508
    %535 = vmatprep.subr.bf16.mxu0 0
    %536 = vmatpush2.bf16.msra.mxu0 0
    %537 = vmatprep.subr.bf16.mxu0 0
    %538 = vmatpush2.bf16.msra.mxu0 0
    %539 = vmatprep.subr.bf16.mxu0 0
    %540 = vmatpush2.bf16.msra.mxu0 0
    %541 = vmatprep.subr.bf16.mxu0 0
    %542 = vmatpush2.bf16.msra.mxu0 0
    %543 = vmatprep.subr.bf16.mxu0 0
    %544 = vmatpush2.bf16.msra.mxu0 0
    %545 = vmatprep.subr.bf16.mxu0 0
    %546 = vmatpush2.bf16.msra.mxu0 0
    %547 = vmatprep.subr.bf16.mxu0 0
    %548 = vmatpush2.bf16.msra.mxu0 0
    %549 = vmatprep.subr.bf16.mxu0 0
    %550 = vmatpush2.bf16.msra.mxu0 0
    %551 = vmatprep.mubr.bf16.mxu0 0
    %552 = vmatmul.mubr.bf16.gmra.mxu0 %v517
    %v553 = vpop.f32.mrf.mxu0
    %v554 = vadd.f32 %v513, %v553
    %v555 = vpop.f32.mrf.mxu0
    %v556 = vpop.f32.mrf.mxu0
    %v557 = vpop.f32.mrf.mxu0
    %558 = vdwg.mxu0
    %v559 = vmax.f32 %v554, 0.0
    %v560 = vld [vmem:[%s9] sm:$0xff]
    %562 = vset.pattern.permute.xlu0 0
    %563 = vperm.xlu0 %562, %v560
    %v564 = vpop.permute.xlu0 %563
    %v566 = vmul.f32 %v559, %v564
    %v567 = vrot.slane %v566, 4
    %v568 = vadd.f32 %v566, %v567
    %v569 = vrot.slane %v568, 2
    %v570 = vadd.f32 %v568, %v569
    %v571 = vrot.slane %v570, 1
    %v572 = vadd.f32 %v570, %v571
    %v573 = vadd.f32 %v490, %v572
    %v574 = vld [vmem:[#allocation2] sm:$0x1]
    %576 = vset.pattern.permute.xlu0 0
    %577 = vperm.xlu0 %576, %v574
    %v578 = vpop.permute.xlu0 %577
    %v580 = vlaneseq
    %v581 = vshrl.u32 %v580, 7
    %v582 = vsub.s32 0, %v581
    %v583 = vrot.slane %v578, %v582
    %v584 = vadd.f32 %v573, %v583
    %v585 = vxor.u32 %v584, 2147483648
    %v586 = vmul.f32 %v585, 1.442695
    %v587 = vpow.pop %v586
    %v588 = vadd.f32 %v587, 1.0
    %v589 = vrcp.pop %v588
    %v590 = vmul.f32 1.0, %v589
    %591 = vst [vmem:[#allocation8 - $0x3] sm:$0x8] %v590
    // Predicated region
    $region54: #{tpu_custom_call.1} parent=1 // pred_check
      _
    $region55: #{tpu_custom_call.1} parent=1 // pred_check_branch
      %593 = sbr.rel (0) target = $region57
    $region56: #{tpu_custom_call.1} parent=1 // pred_region
      %s595 = ssub.s32 16, 16
      %596 = vsyncadd [#allocation5], %s595
      %s598 = sshll.u32 [#allocation8], 4
      %s599 = int_to_ptr.vmem [resolvable:$true] %s598
      %601 = dma.vmem_to_hbm [thread:$0]  %s599, 16, %s11, [#allocation5]
    $region57: #{tpu_custom_call.1} parent=1 // pred_fallthru
      _
    // Predicated region
    $region58: #{tpu_custom_call.1} parent=1 // pred_check
      _
    $region59: #{tpu_custom_call.1} parent=1 // pred_check_branch
      %603 = sbr.rel (0) target = $region61
    $region60: #{tpu_custom_call.1} parent=1 // pred_region
      %604 = dma.done [#allocation5], 16
    $region61: #{tpu_custom_call.1} parent=1 // pred_fallthru
      _
    %605 = vsyncpa [#allocation4], 1
    %606 = vsyncpa [#allocation7], 1
    %607 = vsyncpa [#allocation5], 1

</llo_original>
